<compile_context>
chip_gen: v7x
topology: tpu7x:2x2x1
jax: 0.10.0
libtpu: 0.0.40
codegen_flags: <defaults>
</compile_context>

<pallas_src>
import jax
import jax.numpy as jnp
from jax.experimental import pallas as pl
from jax.experimental.pallas import tpu as pltpu


def _round_up(x: int, m: int) -> int:
    return ((x + m - 1) // m) * m


def _cdiv(a: int, b: int) -> int:
    return -(-a // b)


def _vmem_capacity_bytes() -> int:
    """Physical VMEM per TensorCore; conservative 64 MiB (v7x) fallback."""
    try:
        info = pltpu.get_tpu_info()
        cap = getattr(info, "vmem_capacity_bytes", None)
        if cap:
            return int(cap)
    except Exception:
        pass
    return 64 * 1024 * 1024


def _linear_kernel(x_ref, w_ref, b_ref, o_ref):
    # x_ref : (Bp, K)   latent block (resident, reused for every weight tile)
    # w_ref : (K, TN)   (transposed) weight tile along the output dim
    # b_ref : (1, TN)   matching bias tile
    # o_ref : (Bp, TN)  output tile
    x = x_ref[...].astype(w_ref.dtype)      # no-op for f32; bf16 when streaming
    acc = jnp.dot(x, w_ref[...], preferred_element_type=jnp.float32)
    o_ref[...] = (acc + b_ref[...].astype(jnp.float32)).astype(o_ref.dtype)


def make_vector_to_tensor(weight_t, bias, target_shape, *,
                          use_bf16_weights: bool = False,
                          single_block_cutoff_bytes: int = 2 * 1024 * 1024,
                          target_weight_tile_bytes: int = 4 * 1024 * 1024):
    """Prepare parameters once and return a jitted forward(x) callable.

    Args:
      weight_t: [latent_dim, target_numel] float32 (PyTorch weight, transposed).
      bias:     [target_numel] float32.
      target_shape: tuple, e.g. (C, D, H, W); prod(target_shape) == target_numel.
      use_bf16_weights: stream weights (and cast activations) in bf16 with f32
        accumulate.  Halves weight HBM traffic; numerics differ from f32.
      single_block_cutoff_bytes: below this total footprint, use one gridless
        VMEM-resident block (one DMA, one matmul, one lane-dense store).
      target_weight_tile_bytes: desired per-tile weight DMA size for the
        pipelined path (amortizes per-grid-step overhead).

    Returns:
      forward(x): x of shape [latent_dim] or [B, latent_dim]
                  -> [B, *target_shape] float32.
    """
    target_shape = tuple(int(d) for d in target_shape)
    K, N = int(weight_t.shape[0]), int(weight_t.shape[1])
    target_numel = 1
    for d in target_shape:
        target_numel *= d
    if target_numel != N:
        raise ValueError(
            f"prod(target_shape)={target_numel} does not match "
            f"weight_t.shape[1]={N}")

    vmem_cap = _vmem_capacity_bytes()
    w_dtype = jnp.bfloat16 if use_bf16_weights else jnp.float32
    w_itemsize = jnp.dtype(w_dtype).itemsize

    N_pad = _round_up(N, 128)         # lane-dense output stores
    B_est = 8                         # batch contribution is tiny; plan with 8

    whole_bytes = (K * N_pad * w_itemsize      # weight
                   + B_est * N_pad * 4         # output
                   + B_est * K * 4             # x
                   + N_pad * 4)                # bias
    single_block = whole_bytes <= single_block_cutoff_bytes

    if single_block:
        tn = N_pad
        grid_n = 1
        N_grid = N_pad
    else:
        # Size the N tile by DMA bytes (multi-MiB weight tiles), clamped to a
        # generation-aware VMEM budget (double-buffered weight/bias/output +
        # resident x) that keeps headroom on v7x's 64 MiB VMEM and opens up on
        # v5e/v6e's 128 MiB.
        tile_budget = int(vmem_cap * 0.55)
        tn_dma = max(128, (target_weight_tile_bytes // (K * w_itemsize))
                     // 128 * 128)
        per_lane = 2 * K * w_itemsize + 2 * 4 + 2 * B_est * 4
        tn_vmem = max(128, ((tile_budget - B_est * K * 4) // per_lane)
                      // 128 * 128)
        tn = max(128, min(tn_dma, tn_vmem, N_pad))
        grid_n = _cdiv(N_pad, tn)
        # Even grid so the "parallel" N axis load-balances across v7x's two
        # TensorCores (no effect on single-TC v5e/v6e).
        if grid_n % 2 == 1:
            grid_n += 1
        tn = max(128, _round_up(_cdiv(N_pad, grid_n), 128))
        grid_n = _cdiv(N_pad, tn)
        if grid_n % 2 == 1:
            grid_n += 1
        N_grid = tn * grid_n

    # ---- One-time parameter prep (eager, outside the jitted call path). ----
    w_prep = weight_t.astype(w_dtype)
    b_prep = bias.astype(jnp.float32)
    if N_grid != N:
        w_prep = jnp.pad(w_prep, ((0, 0), (0, N_grid - N)))
        b_prep = jnp.pad(b_prep, (0, N_grid - N))
    b_prep = b_prep.reshape(1, N_grid)
    w_prep = jax.block_until_ready(w_prep)
    b_prep = jax.block_until_ready(b_prep)

    def _fwd(x, w, b2):
        if x.ndim == 1:
            x = x[None, :]
        B = x.shape[0]
        B_pad = _round_up(max(B, 1), 8)    # unmasked sublane stores
        xb = x.astype(jnp.float32)
        if B_pad != B:
            xb = jnp.pad(xb, ((0, B_pad - B), (0, 0)))

        if single_block:
            need = (K * N_grid * w_itemsize + B_pad * N_grid * 4
                    + B_pad * K * 4 + N_grid * 4)
            vmem_limit = int(min(vmem_cap * 3 // 4,
                                 max(4 * need, 16 * 1024 * 1024)))
            out = pl.pallas_call(
                _linear_kernel,
                out_shape=jax.ShapeDtypeStruct((B_pad, N_grid), jnp.float32),
                in_specs=[
                    pl.BlockSpec(memory_space=pltpu.MemorySpace.VMEM),  # x
                    pl.BlockSpec(memory_space=pltpu.MemorySpace.VMEM),  # weight
                    pl.BlockSpec(memory_space=pltpu.MemorySpace.VMEM),  # bias
                ],
                out_specs=pl.BlockSpec(memory_space=pltpu.MemorySpace.VMEM),
                compiler_params=pltpu.CompilerParams(
                    vmem_limit_bytes=vmem_limit),
            )(xb, w, b2)
        else:
            need = (2 * K * tn * w_itemsize + 2 * tn * 4
                    + 2 * B_pad * tn * 4 + B_pad * K * 4)
            vmem_limit = int(min(vmem_cap * 3 // 4,
                                 max(2 * need, 16 * 1024 * 1024)))
            out = pl.pallas_call(
                _linear_kernel,
                out_shape=jax.ShapeDtypeStruct((B_pad, N_grid), jnp.float32),
                grid=(grid_n,),
                in_specs=[
                    pl.BlockSpec((B_pad, K), lambda j: (0, 0)),  # x: resident
                    pl.BlockSpec((K, tn), lambda j: (0, j)),     # weight tile
                    pl.BlockSpec((1, tn), lambda j: (0, j)),     # bias tile
                ],
                out_specs=pl.BlockSpec((B_pad, tn), lambda j: (0, j)),
                compiler_params=pltpu.CompilerParams(
                    dimension_semantics=("parallel",),
                    vmem_limit_bytes=vmem_limit),
            )(xb, w, b2)

        out = out[:B, :N]                        # drop sublane/lane padding
        return out.reshape((B,) + target_shape)  # metadata-only view()

    _fwd_jit = jax.jit(_fwd)

    def forward(x):
        return _fwd_jit(x, w_prep, b_prep)

    return forward


if __name__ == "__main__":
    # Shapes consistent with the module: latent_dim=32, target_shape=(4, 2, 16, 16).
    latent_dim = 32
    target_shape = (4, 2, 16, 16)            # (out_channels, D, H, W)
    batch = 2

    target_numel = 1
    for d in target_shape:
        target_numel *= d                    # 4*2*16*16 = 2048

    key = jax.random.PRNGKey(0)
    kx, kw, kb = jax.random.split(key, 3)

    # Deterministic synthetic parameters (nn.Linear(latent_dim, target_numel)).
    # PyTorch weight is [target_numel, latent_dim]; we store its transpose.
    bound = 1.0 / (latent_dim ** 0.5)
    weight_t = jax.random.uniform(
        kw, (latent_dim, target_numel), jnp.float32, minval=-bound, maxval=bound)
    bias = jax.random.uniform(
        kb, (target_numel,), jnp.float32, minval=-bound, maxval=bound)

    x = jax.random.normal(kx, (batch, latent_dim), jnp.float32)
    ref = (x @ weight_t + bias).reshape((batch,) + target_shape)

    # --- Path 1: single VMEM-resident block (default for this size). ---
    forward = make_vector_to_tensor(weight_t, bias, target_shape)
    out = jax.block_until_ready(forward(x))
    assert out.shape == (batch,) + target_shape
    assert jnp.allclose(out, ref, atol=1e-5, rtol=1e-5)

    # 1-D input path (module unsqueezes to batch=1).
    x1 = jax.random.normal(jax.random.PRNGKey(1), (latent_dim,), jnp.float32)
    out1 = jax.block_until_ready(forward(x1))
    ref1 = (x1[None, :] @ weight_t + bias).reshape((1,) + target_shape)
    assert out1.shape == (1,) + target_shape
    assert jnp.allclose(out1, ref1, atol=1e-5, rtol=1e-5)

    # --- Path 2: force the pipelined N-tiled path on the same small shapes. ---
    forward_tiled = make_vector_to_tensor(
        weight_t, bias, target_shape, single_block_cutoff_bytes=0)
    out_t = jax.block_until_ready(forward_tiled(x))
    assert out_t.shape == (batch,) + target_shape
    assert jnp.allclose(out_t, ref, atol=1e-5, rtol=1e-5)

    # --- bf16 weight streaming (offline cast; f32 accumulate), loose check. ---
    forward_bf16 = make_vector_to_tensor(
        weight_t, bias, target_shape, use_bf16_weights=True)
    out_b = jax.block_until_ready(forward_bf16(x))
    assert out_b.shape == (batch,) + target_shape
    assert jnp.allclose(out_b, ref, atol=5e-2, rtol=5e-2)

    print("KERNEL_OK")
</pallas_src>

<mosaic_0001>
module attributes {stable_mosaic.version = 11 : i64} {
  func.func @_linear_kernel(%arg0: memref<8x32xf32, #tpu.memory_space<vmem>>, %arg1: memref<32x2048xf32, #tpu.memory_space<vmem>>, %arg2: memref<1x2048xf32, #tpu.memory_space<vmem>>, %arg3: memref<8x2048xf32, #tpu.memory_space<vmem>>) attributes {dimension_semantics = [], scalar_prefetch = 0 : i64, scratch_operands = 0 : i64, tpu.core_type = #tpu.core_type<tc>} {
    %c0 = arith.constant 0 : index
    %c0_0 = arith.constant 0 : index
    %0 = vector.load %arg0[%c0, %c0_0] : memref<8x32xf32, #tpu.memory_space<vmem>>, vector<8x32xf32>
    %c0_1 = arith.constant 0 : index
    %c0_2 = arith.constant 0 : index
    %1 = vector.load %arg1[%c0_1, %c0_2] : memref<32x2048xf32, #tpu.memory_space<vmem>>, vector<32x2048xf32>
    %cst = arith.constant dense<0.000000e+00> : vector<8x2048xf32>
    %2 = tpu.matmul %0, %1, %cst {dimension_numbers = #tpu.dot_dimension_numbers<[1], [0], [0], [1], [0, 0, 1, 1], [], []>} : vector<8x32xf32>, vector<32x2048xf32>, vector<8x2048xf32> -> vector<8x2048xf32>
    %c0_3 = arith.constant 0 : index
    %c0_4 = arith.constant 0 : index
    %3 = vector.load %arg2[%c0_3, %c0_4] : memref<1x2048xf32, #tpu.memory_space<vmem>>, vector<1x2048xf32>
    %4 = vector.broadcast %3 : vector<1x2048xf32> to vector<8x2048xf32>
    %5 = arith.addf %2, %4 : vector<8x2048xf32>
    %c0_5 = arith.constant 0 : index
    %c0_6 = arith.constant 0 : index
    %6 = vector.load %arg3[%c0_5, %c0_6] : memref<8x2048xf32, #tpu.memory_space<vmem>>, vector<8x2048xf32>
    tpu.vector_store %arg3[%c0_5, %c0_6], %5 {strides = array<i32>} : memref<8x2048xf32, #tpu.memory_space<vmem>>, vector<8x2048xf32>,
    return
  }
}

</mosaic_0001>

<llo_original>
// kernel: _fwd.1
$region0: #{_fwd.1}
  #allocation0 [shape = 'u32[]', space=smem, size = 0x4, offset = 0x4, fixed_abs, tag = 'smem constant byte address 0x4 - core index']
  #allocation1 [shape = 'u32[144,128]{1,0:T(1,128)}', space=vmem, size = 0x12000, scoped, tag = 'internal scratch']
  %s0 = inlined_call_operand.vmem [shape: f32[8,32], index: 0, kind: input, shape index: {}]
  %s1 = inlined_call_operand.hbm [shape: f32[32,2048], index: 1, kind: input, shape index: {}]
  %s2 = inlined_call_operand.vmem [shape: f32[1,2048], index: 2, kind: input, shape index: {}]
  %s3 = inlined_call_operand.vmem [shape: f32[8,2048], index: 3, kind: output, shape index: {}]
  %s4 = sld [smem:[#allocation0]]
  $region26: #{_fwd.1} parent=0
    _
  %s6 = ssub.s32 1, %s4
  %s7 = scalar_select 0, %s6, %s4
  $region1: #{_fwd.1} parent=0
    #allocation2 [shape = 'u8[262144]{0}', space=vmem, size = 0x40000, scoped, tag = 'input window, operand 1, single buffered']
    #allocation3 [shape = 's32[1]{0}', space=sflag, size = 0x4, scoped, tag = 'scoped memory for _fwd.1']
    %8 = vsyncpa [#allocation3], 0
    // Predicated region
    $region2: #{_fwd.1} parent=1 // pred_check
      _
    $region3: #{_fwd.1} parent=1 // pred_check_branch
      %10 = sbr.rel (0) target = $region5
    $region4: #{_fwd.1} parent=1 // pred_region
      _
    $region5: #{_fwd.1} parent=1 // pred_fallthru
      _
    // Predicated region
    $region6: #{_fwd.1} parent=1 // pred_check
      _
    $region7: #{_fwd.1} parent=1 // pred_check_branch
      %12 = sbr.rel (0) target = $region9
    $region8: #{_fwd.1} parent=1 // pred_region
      %s14 = ssub.s32 8192, 8192
      %15 = vsyncadd [#allocation3], %s14
      %s16 = sshll.u32 [#allocation2], 4
      %s17 = int_to_ptr.vmem [resolvable:$true] %s16
      %22 = dma.hbm_to_vmem [thread:$0]  %s1, 8192, %s17, [#allocation3], 2048, 2048, 128
    $region9: #{_fwd.1} parent=1 // pred_fallthru
      _
    // Predicated region
    $region10: #{_fwd.1} parent=1 // pred_check
      _
    $region11: #{_fwd.1} parent=1 // pred_check_branch
      %24 = sbr.rel (0) target = $region13
    $region12: #{_fwd.1} parent=1 // pred_region
      _
    $region13: #{_fwd.1} parent=1 // pred_fallthru
      _
    // Predicated region
    $region14: #{_fwd.1} parent=1 // pred_check
      _
    $region15: #{_fwd.1} parent=1 // pred_check_branch
      %26 = sbr.rel (0) target = $region17
    $region16: #{_fwd.1} parent=1 // pred_region
      %27 = dma.done [#allocation3], 8192
    $region17: #{_fwd.1} parent=1 // pred_fallthru
      _
    %v28 = vld [vmem:[%s0] sm:$0xff]
    %v29 = vld [vmem:[#allocation2] sm:$0xff]
    %v30 = vld [vmem:[#allocation2 + $0x8] sm:$0xff]
    %v31 = vld [vmem:[#allocation2 + $0x10] sm:$0xff]
    %v32 = vld [vmem:[#allocation2 + $0x18] sm:$0xff]
    %v33 = vld [vmem:[#allocation2 + $0x20] sm:$0xff]
    %v34 = vld [vmem:[#allocation2 + $0x28] sm:$0xff]
    %v35 = vld [vmem:[#allocation2 + $0x30] sm:$0xff]
    %v36 = vld [vmem:[#allocation2 + $0x38] sm:$0xff]
    %v37 = vld [vmem:[#allocation2 + $0x40] sm:$0xff]
    %v38 = vld [vmem:[#allocation2 + $0x48] sm:$0xff]
    %v39 = vld [vmem:[#allocation2 + $0x50] sm:$0xff]
    %v40 = vld [vmem:[#allocation2 + $0x58] sm:$0xff]
    %v41 = vld [vmem:[#allocation2 + $0x60] sm:$0xff]
    %v42 = vld [vmem:[#allocation2 + $0x68] sm:$0xff]
    %v43 = vld [vmem:[#allocation2 + $0x70] sm:$0xff]
    %v44 = vld [vmem:[#allocation2 + $0x78] sm:$0xff]
    %v45 = vld [vmem:[#allocation2 + $0x80] sm:$0xff]
    %v46 = vld [vmem:[#allocation2 + $0x88] sm:$0xff]
    %v47 = vld [vmem:[#allocation2 + $0x90] sm:$0xff]
    %v48 = vld [vmem:[#allocation2 + $0x98] sm:$0xff]
    %v49 = vld [vmem:[#allocation2 + $0xa0] sm:$0xff]
    %v50 = vld [vmem:[#allocation2 + $0xa8] sm:$0xff]
    %v51 = vld [vmem:[#allocation2 + $0xb0] sm:$0xff]
    %v52 = vld [vmem:[#allocation2 + $0xb8] sm:$0xff]
    %v53 = vld [vmem:[#allocation2 + $0xc0] sm:$0xff]
    %v54 = vld [vmem:[#allocation2 + $0xc8] sm:$0xff]
    %v55 = vld [vmem:[#allocation2 + $0xd0] sm:$0xff]
    %v56 = vld [vmem:[#allocation2 + $0xd8] sm:$0xff]
    %v57 = vld [vmem:[#allocation2 + $0xe0] sm:$0xff]
    %v58 = vld [vmem:[#allocation2 + $0xe8] sm:$0xff]
    %v59 = vld [vmem:[#allocation2 + $0xf0] sm:$0xff]
    %v60 = vld [vmem:[#allocation2 + $0xf8] sm:$0xff]
    %v61 = vld [vmem:[#allocation2 + $0x100] sm:$0xff]
    %v62 = vld [vmem:[#allocation2 + $0x108] sm:$0xff]
    %v63 = vld [vmem:[#allocation2 + $0x110] sm:$0xff]
    %v64 = vld [vmem:[#allocation2 + $0x118] sm:$0xff]
    %v65 = vld [vmem:[#allocation2 + $0x120] sm:$0xff]
    %v66 = vld [vmem:[#allocation2 + $0x128] sm:$0xff]
    %v67 = vld [vmem:[#allocation2 + $0x130] sm:$0xff]
    %v68 = vld [vmem:[#allocation2 + $0x138] sm:$0xff]
    %v69 = vld [vmem:[#allocation2 + $0x140] sm:$0xff]
    %v70 = vld [vmem:[#allocation2 + $0x148] sm:$0xff]
    %v71 = vld [vmem:[#allocation2 + $0x150] sm:$0xff]
    %v72 = vld [vmem:[#allocation2 + $0x158] sm:$0xff]
    %v73 = vld [vmem:[#allocation2 + $0x160] sm:$0xff]
    %v74 = vld [vmem:[#allocation2 + $0x168] sm:$0xff]
    %v75 = vld [vmem:[#allocation2 + $0x170] sm:$0xff]
    %v76 = vld [vmem:[#allocation2 + $0x178] sm:$0xff]
    %v77 = vld [vmem:[#allocation2 + $0x180] sm:$0xff]
    %v78 = vld [vmem:[#allocation2 + $0x188] sm:$0xff]
    %v79 = vld [vmem:[#allocation2 + $0x190] sm:$0xff]
    %v80 = vld [vmem:[#allocation2 + $0x198] sm:$0xff]
    %v81 = vld [vmem:[#allocation2 + $0x1a0] sm:$0xff]
    %v82 = vld [vmem:[#allocation2 + $0x1a8] sm:$0xff]
    %v83 = vld [vmem:[#allocation2 + $0x1b0] sm:$0xff]
    %v84 = vld [vmem:[#allocation2 + $0x1b8] sm:$0xff]
    %v85 = vld [vmem:[#allocation2 + $0x1c0] sm:$0xff]
    %v86 = vld [vmem:[#allocation2 + $0x1c8] sm:$0xff]
    %v87 = vld [vmem:[#allocation2 + $0x1d0] sm:$0xff]
    %v88 = vld [vmem:[#allocation2 + $0x1d8] sm:$0xff]
    %v89 = vld [vmem:[#allocation2 + $0x1e0] sm:$0xff]
    %v90 = vld [vmem:[#allocation2 + $0x1e8] sm:$0xff]
    %v91 = vld [vmem:[#allocation2 + $0x1f0] sm:$0xff]
    %v92 = vld [vmem:[#allocation2 + $0x1f8] sm:$0xff]
    %v93 = vld [vmem:[%s2] sm:$0xff]
    %v94 = vld [vmem:[%s2 + $0x8] sm:$0xff]
    %v97 = vlaneseq
    %v98 = vshrl.u32 %v97, 7
    %v99 = vsub.s32 0, %v98
    %v100 = vrot.slane %v93, %v99
    %v101 = vlaneseq
    %v102 = vshrl.u32 %v101, 7
    %v103 = vsub.s32 1, %v102
    %v104 = vrot.slane %v93, %v103
    %v105 = vlaneseq
    %v106 = vshrl.u32 %v105, 7
    %v107 = vsub.s32 2, %v106
    %v108 = vrot.slane %v93, %v107
    %v109 = vlaneseq
    %v110 = vshrl.u32 %v109, 7
    %v111 = vsub.s32 3, %v110
    %v112 = vrot.slane %v93, %v111
    %v113 = vlaneseq
    %v114 = vshrl.u32 %v113, 7
    %v115 = vsub.s32 4, %v114
    %v116 = vrot.slane %v93, %v115
    %v117 = vlaneseq
    %v118 = vshrl.u32 %v117, 7
    %v119 = vsub.s32 5, %v118
    %v120 = vrot.slane %v93, %v119
    %v121 = vlaneseq
    %v122 = vshrl.u32 %v121, 7
    %v123 = vsub.s32 6, %v122
    %v124 = vrot.slane %v93, %v123
    %v125 = vlaneseq
    %v126 = vshrl.u32 %v125, 7
    %v127 = vsub.s32 7, %v126
    %v128 = vrot.slane %v93, %v127
    %v129 = vlaneseq
    %v130 = vshrl.u32 %v129, 7
    %v131 = vsub.s32 0, %v130
    %v132 = vrot.slane %v94, %v131
    %v133 = vlaneseq
    %v134 = vshrl.u32 %v133, 7
    %v135 = vsub.s32 1, %v134
    %v136 = vrot.slane %v94, %v135
    %v137 = vlaneseq
    %v138 = vshrl.u32 %v137, 7
    %v139 = vsub.s32 2, %v138
    %v140 = vrot.slane %v94, %v139
    %v141 = vlaneseq
    %v142 = vshrl.u32 %v141, 7
    %v143 = vsub.s32 3, %v142
    %v144 = vrot.slane %v94, %v143
    %v145 = vlaneseq
    %v146 = vshrl.u32 %v145, 7
    %v147 = vsub.s32 4, %v146
    %v148 = vrot.slane %v94, %v147
    %v149 = vlaneseq
    %v150 = vshrl.u32 %v149, 7
    %v151 = vsub.s32 5, %v150
    %v152 = vrot.slane %v94, %v151
    %v153 = vlaneseq
    %v154 = vshrl.u32 %v153, 7
    %v155 = vsub.s32 6, %v154
    %v156 = vrot.slane %v94, %v155
    %v157 = vlaneseq
    %v158 = vshrl.u32 %v157, 7
    %v159 = vsub.s32 7, %v158
    %v160 = vrot.slane %v94, %v159
    %vm177 = vcmask 261120
    %v179 = vsel %vm177, %v28, 0
    %181 = vmatprep.subr.mxu0 %v30
    %182 = vmatpush1.msra.mxu0 %v29
    %183 = vmatprep.subr.mxu0 %v46
    %184 = vmatpush1.msra.mxu0 %v45
    %185 = vmatprep.subr.mxu0 %v62
    %186 = vmatpush1.msra.mxu0 %v61
    %187 = vmatprep.subr.mxu0 %v78
    %188 = vmatpush1.msra.mxu0 %v77
    %189 = vmatprep.subr.mxu0 0.0
    %190 = vmatpush1.msra.mxu0 0.0
    %191 = vmatprep.subr.mxu0 0.0
    %192 = vmatpush1.msra.mxu0 0.0
    %193 = vmatprep.subr.mxu0 0.0
    %194 = vmatpush1.msra.mxu0 0.0
    %195 = vmatprep.subr.mxu0 0.0
    %196 = vmatpush1.msra.mxu0 0.0
    %197 = vmatprep.subr.mxu0 0.0
    %198 = vmatpush1.msra.mxu0 0.0
    %199 = vmatprep.subr.mxu0 0.0
    %200 = vmatpush1.msra.mxu0 0.0
    %201 = vmatprep.subr.mxu0 0.0
    %202 = vmatpush1.msra.mxu0 0.0
    %203 = vmatprep.subr.mxu0 0.0
    %204 = vmatpush1.msra.mxu0 0.0
    %205 = vmatprep.subr.mxu0 0.0
    %206 = vmatpush1.msra.mxu0 0.0
    %207 = vmatprep.subr.mxu0 0.0
    %208 = vmatpush1.msra.mxu0 0.0
    %209 = vmatprep.subr.mxu0 0.0
    %210 = vmatpush1.msra.mxu0 0.0
    %211 = vmatprep.subr.mxu0 0.0
    %212 = vmatpush1.msra.mxu0 0.0
    %213 = vmatprep.subr.mxu0 0.0
    %214 = vmatpush1.msra.mxu0 0.0
    %215 = vmatprep.subr.mxu0 0.0
    %216 = vmatpush1.msra.mxu0 0.0
    %217 = vmatprep.subr.mxu0 0.0
    %218 = vmatpush1.msra.mxu0 0.0
    %219 = vmatprep.subr.mxu0 0.0
    %220 = vmatpush1.msra.mxu0 0.0
    %221 = vmatprep.subr.mxu0 0.0
    %222 = vmatpush1.msra.mxu0 0.0
    %223 = vmatprep.subr.mxu0 0.0
    %224 = vmatpush1.msra.mxu0 0.0
    %225 = vmatprep.subr.mxu0 0.0
    %226 = vmatpush1.msra.mxu0 0.0
    %227 = vmatprep.subr.mxu0 0.0
    %228 = vmatpush1.msra.mxu0 0.0
    %229 = vmatprep.subr.mxu0 0.0
    %230 = vmatpush1.msra.mxu0 0.0
    %231 = vmatprep.subr.mxu0 0.0
    %232 = vmatpush1.msra.mxu0 0.0
    %233 = vmatprep.subr.mxu0 0.0
    %234 = vmatpush1.msra.mxu0 0.0
    %235 = vmatprep.subr.mxu0 0.0
    %236 = vmatpush1.msra.mxu0 0.0
    %237 = vmatprep.subr.mxu0 0.0
    %238 = vmatpush1.msra.mxu0 0.0
    %239 = vmatprep.subr.mxu0 0.0
    %240 = vmatpush1.msra.mxu0 0.0
    %241 = vmatprep.subr.mxu0 0.0
    %242 = vmatpush1.msra.mxu0 0.0
    %243 = vmatprep.subr.mxu0 0.0
    %244 = vmatpush1.msra.mxu0 0.0
    %245 = vmatprep.mubr.f32.mxu0 0.0
    %246 = vmatmul.mubr.f32.gmra.mrb[0].mxu0 %v179
    %v247 = vpop.f32.mrb[0].mxu0
    %v248 = vadd.f32 %v100, %v247
    %v249 = vpop.f32.mrb[0].mxu0
    %v250 = vadd.f32 %v104, %v249
    %251 = vdwg.mxu0
    %252 = vmatprep.subr.mxu0 %v32
    %253 = vmatpush1.msra.mxu0 %v31
    %254 = vmatprep.subr.mxu0 %v48
    %255 = vmatpush1.msra.mxu0 %v47
    %256 = vmatprep.subr.mxu0 %v64
    %257 = vmatpush1.msra.mxu0 %v63
    %258 = vmatprep.subr.mxu0 %v80
    %259 = vmatpush1.msra.mxu0 %v79
    %260 = vmatprep.subr.mxu0 0.0
    %261 = vmatpush1.msra.mxu0 0.0
    %262 = vmatprep.subr.mxu0 0.0
    %263 = vmatpush1.msra.mxu0 0.0
    %264 = vmatprep.subr.mxu0 0.0
    %265 = vmatpush1.msra.mxu0 0.0
    %266 = vmatprep.subr.mxu0 0.0
    %267 = vmatpush1.msra.mxu0 0.0
    %268 = vmatprep.subr.mxu0 0.0
    %269 = vmatpush1.msra.mxu0 0.0
    %270 = vmatprep.subr.mxu0 0.0
    %271 = vmatpush1.msra.mxu0 0.0
    %272 = vmatprep.subr.mxu0 0.0
    %273 = vmatpush1.msra.mxu0 0.0
    %274 = vmatprep.subr.mxu0 0.0
    %275 = vmatpush1.msra.mxu0 0.0
    %276 = vmatprep.subr.mxu0 0.0
    %277 = vmatpush1.msra.mxu0 0.0
    %278 = vmatprep.subr.mxu0 0.0
    %279 = vmatpush1.msra.mxu0 0.0
    %280 = vmatprep.subr.mxu0 0.0
    %281 = vmatpush1.msra.mxu0 0.0
    %282 = vmatprep.subr.mxu0 0.0
    %283 = vmatpush1.msra.mxu0 0.0
    %284 = vmatprep.subr.mxu0 0.0
    %285 = vmatpush1.msra.mxu0 0.0
    %286 = vmatprep.subr.mxu0 0.0
    %287 = vmatpush1.msra.mxu0 0.0
    %288 = vmatprep.subr.mxu0 0.0
    %289 = vmatpush1.msra.mxu0 0.0
    %290 = vmatprep.subr.mxu0 0.0
    %291 = vmatpush1.msra.mxu0 0.0
    %292 = vmatprep.subr.mxu0 0.0
    %293 = vmatpush1.msra.mxu0 0.0
    %294 = vmatprep.subr.mxu0 0.0
    %295 = vmatpush1.msra.mxu0 0.0
    %296 = vmatprep.subr.mxu0 0.0
    %297 = vmatpush1.msra.mxu0 0.0
    %298 = vmatprep.subr.mxu0 0.0
    %299 = vmatpush1.msra.mxu0 0.0
    %300 = vmatprep.subr.mxu0 0.0
    %301 = vmatpush1.msra.mxu0 0.0
    %302 = vmatprep.subr.mxu0 0.0
    %303 = vmatpush1.msra.mxu0 0.0
    %304 = vmatprep.subr.mxu0 0.0
    %305 = vmatpush1.msra.mxu0 0.0
    %306 = vmatprep.subr.mxu0 0.0
    %307 = vmatpush1.msra.mxu0 0.0
    %308 = vmatprep.subr.mxu0 0.0
    %309 = vmatpush1.msra.mxu0 0.0
    %310 = vmatprep.subr.mxu0 0.0
    %311 = vmatpush1.msra.mxu0 0.0
    %312 = vmatprep.subr.mxu0 0.0
    %313 = vmatpush1.msra.mxu0 0.0
    %314 = vmatprep.subr.mxu0 0.0
    %315 = vmatpush1.msra.mxu0 0.0
    %316 = vmatprep.mubr.f32.mxu0 0.0
    %317 = vmatmul.mubr.f32.gmra.mrb[0].mxu0 %v179
    %v318 = vpop.f32.mrb[0].mxu0
    %v319 = vadd.f32 %v108, %v318
    %v320 = vpop.f32.mrb[0].mxu0
    %v321 = vadd.f32 %v112, %v320
    %322 = vdwg.mxu0
    %323 = vmatprep.subr.mxu0 %v34
    %324 = vmatpush1.msra.mxu0 %v33
    %325 = vmatprep.subr.mxu0 %v50
    %326 = vmatpush1.msra.mxu0 %v49
    %327 = vmatprep.subr.mxu0 %v66
    %328 = vmatpush1.msra.mxu0 %v65
    %329 = vmatprep.subr.mxu0 %v82
    %330 = vmatpush1.msra.mxu0 %v81
    %331 = vmatprep.subr.mxu0 0.0
    %332 = vmatpush1.msra.mxu0 0.0
    %333 = vmatprep.subr.mxu0 0.0
    %334 = vmatpush1.msra.mxu0 0.0
    %335 = vmatprep.subr.mxu0 0.0
    %336 = vmatpush1.msra.mxu0 0.0
    %337 = vmatprep.subr.mxu0 0.0
    %338 = vmatpush1.msra.mxu0 0.0
    %339 = vmatprep.subr.mxu0 0.0
    %340 = vmatpush1.msra.mxu0 0.0
    %341 = vmatprep.subr.mxu0 0.0
    %342 = vmatpush1.msra.mxu0 0.0
    %343 = vmatprep.subr.mxu0 0.0
    %344 = vmatpush1.msra.mxu0 0.0
    %345 = vmatprep.subr.mxu0 0.0
    %346 = vmatpush1.msra.mxu0 0.0
    %347 = vmatprep.subr.mxu0 0.0
    %348 = vmatpush1.msra.mxu0 0.0
    %349 = vmatprep.subr.mxu0 0.0
    %350 = vmatpush1.msra.mxu0 0.0
    %351 = vmatprep.subr.mxu0 0.0
    %352 = vmatpush1.msra.mxu0 0.0
    %353 = vmatprep.subr.mxu0 0.0
    %354 = vmatpush1.msra.mxu0 0.0
    %355 = vmatprep.subr.mxu0 0.0
    %356 = vmatpush1.msra.mxu0 0.0
    %357 = vmatprep.subr.mxu0 0.0
    %358 = vmatpush1.msra.mxu0 0.0
    %359 = vmatprep.subr.mxu0 0.0
    %360 = vmatpush1.msra.mxu0 0.0
    %361 = vmatprep.subr.mxu0 0.0
    %362 = vmatpush1.msra.mxu0 0.0
    %363 = vmatprep.subr.mxu0 0.0
    %364 = vmatpush1.msra.mxu0 0.0
    %365 = vmatprep.subr.mxu0 0.0
    %366 = vmatpush1.msra.mxu0 0.0
    %367 = vmatprep.subr.mxu0 0.0
    %368 = vmatpush1.msra.mxu0 0.0
    %369 = vmatprep.subr.mxu0 0.0
    %370 = vmatpush1.msra.mxu0 0.0
    %371 = vmatprep.subr.mxu0 0.0
    %372 = vmatpush1.msra.mxu0 0.0
    %373 = vmatprep.subr.mxu0 0.0
    %374 = vmatpush1.msra.mxu0 0.0
    %375 = vmatprep.subr.mxu0 0.0
    %376 = vmatpush1.msra.mxu0 0.0
    %377 = vmatprep.subr.mxu0 0.0
    %378 = vmatpush1.msra.mxu0 0.0
    %379 = vmatprep.subr.mxu0 0.0
    %380 = vmatpush1.msra.mxu0 0.0
    %381 = vmatprep.subr.mxu0 0.0
    %382 = vmatpush1.msra.mxu0 0.0
    %383 = vmatprep.subr.mxu0 0.0
    %384 = vmatpush1.msra.mxu0 0.0
    %385 = vmatprep.subr.mxu0 0.0
    %386 = vmatpush1.msra.mxu0 0.0
    %387 = vmatprep.mubr.f32.mxu0 0.0
    %388 = vmatmul.mubr.f32.gmra.mrb[0].mxu0 %v179
    %v389 = vpop.f32.mrb[0].mxu0
    %v390 = vadd.f32 %v116, %v389
    %v391 = vpop.f32.mrb[0].mxu0
    %v392 = vadd.f32 %v120, %v391
    %393 = vdwg.mxu0
    %394 = vmatprep.subr.mxu0 %v36
    %395 = vmatpush1.msra.mxu0 %v35
    %396 = vmatprep.subr.mxu0 %v52
    %397 = vmatpush1.msra.mxu0 %v51
    %398 = vmatprep.subr.mxu0 %v68
    %399 = vmatpush1.msra.mxu0 %v67
    %400 = vmatprep.subr.mxu0 %v84
    %401 = vmatpush1.msra.mxu0 %v83
    %402 = vmatprep.subr.mxu0 0.0
    %403 = vmatpush1.msra.mxu0 0.0
    %404 = vmatprep.subr.mxu0 0.0
    %405 = vmatpush1.msra.mxu0 0.0
    %406 = vmatprep.subr.mxu0 0.0
    %407 = vmatpush1.msra.mxu0 0.0
    %408 = vmatprep.subr.mxu0 0.0
    %409 = vmatpush1.msra.mxu0 0.0
    %410 = vmatprep.subr.mxu0 0.0
    %411 = vmatpush1.msra.mxu0 0.0
    %412 = vmatprep.subr.mxu0 0.0
    %413 = vmatpush1.msra.mxu0 0.0
    %414 = vmatprep.subr.mxu0 0.0
    %415 = vmatpush1.msra.mxu0 0.0
    %416 = vmatprep.subr.mxu0 0.0
    %417 = vmatpush1.msra.mxu0 0.0
    %418 = vmatprep.subr.mxu0 0.0
    %419 = vmatpush1.msra.mxu0 0.0
    %420 = vmatprep.subr.mxu0 0.0
    %421 = vmatpush1.msra.mxu0 0.0
    %422 = vmatprep.subr.mxu0 0.0
    %423 = vmatpush1.msra.mxu0 0.0
    %424 = vmatprep.subr.mxu0 0.0
    %425 = vmatpush1.msra.mxu0 0.0
    %426 = vmatprep.subr.mxu0 0.0
    %427 = vmatpush1.msra.mxu0 0.0
    %428 = vmatprep.subr.mxu0 0.0
    %429 = vmatpush1.msra.mxu0 0.0
    %430 = vmatprep.subr.mxu0 0.0
    %431 = vmatpush1.msra.mxu0 0.0
    %432 = vmatprep.subr.mxu0 0.0
    %433 = vmatpush1.msra.mxu0 0.0
    %434 = vmatprep.subr.mxu0 0.0
    %435 = vmatpush1.msra.mxu0 0.0
    %436 = vmatprep.subr.mxu0 0.0
    %437 = vmatpush1.msra.mxu0 0.0
    %438 = vmatprep.subr.mxu0 0.0
    %439 = vmatpush1.msra.mxu0 0.0
    %440 = vmatprep.subr.mxu0 0.0
    %441 = vmatpush1.msra.mxu0 0.0
    %442 = vmatprep.subr.mxu0 0.0
    %443 = vmatpush1.msra.mxu0 0.0
    %444 = vmatprep.subr.mxu0 0.0
    %445 = vmatpush1.msra.mxu0 0.0
    %446 = vmatprep.subr.mxu0 0.0
    %447 = vmatpush1.msra.mxu0 0.0
    %448 = vmatprep.subr.mxu0 0.0
    %449 = vmatpush1.msra.mxu0 0.0
    %450 = vmatprep.subr.mxu0 0.0
    %451 = vmatpush1.msra.mxu0 0.0
    %452 = vmatprep.subr.mxu0 0.0
    %453 = vmatpush1.msra.mxu0 0.0
    %454 = vmatprep.subr.mxu0 0.0
    %455 = vmatpush1.msra.mxu0 0.0
    %456 = vmatprep.subr.mxu0 0.0
    %457 = vmatpush1.msra.mxu0 0.0
    %458 = vmatprep.mubr.f32.mxu0 0.0
    %459 = vmatmul.mubr.f32.gmra.mrb[0].mxu0 %v179
    %v460 = vpop.f32.mrb[0].mxu0
    %v461 = vadd.f32 %v124, %v460
    %v462 = vpop.f32.mrb[0].mxu0
    %v463 = vadd.f32 %v128, %v462
    %464 = vdwg.mxu0
    %465 = vmatprep.subr.mxu0 %v38
    %466 = vmatpush1.msra.mxu0 %v37
    %467 = vmatprep.subr.mxu0 %v54
    %468 = vmatpush1.msra.mxu0 %v53
    %469 = vmatprep.subr.mxu0 %v70
    %470 = vmatpush1.msra.mxu0 %v69
    %471 = vmatprep.subr.mxu0 %v86
    %472 = vmatpush1.msra.mxu0 %v85
    %473 = vmatprep.subr.mxu0 0.0
    %474 = vmatpush1.msra.mxu0 0.0
    %475 = vmatprep.subr.mxu0 0.0
    %476 = vmatpush1.msra.mxu0 0.0
    %477 = vmatprep.subr.mxu0 0.0
    %478 = vmatpush1.msra.mxu0 0.0
    %479 = vmatprep.subr.mxu0 0.0
    %480 = vmatpush1.msra.mxu0 0.0
    %481 = vmatprep.subr.mxu0 0.0
    %482 = vmatpush1.msra.mxu0 0.0
    %483 = vmatprep.subr.mxu0 0.0
    %484 = vmatpush1.msra.mxu0 0.0
    %485 = vmatprep.subr.mxu0 0.0
    %486 = vmatpush1.msra.mxu0 0.0
    %487 = vmatprep.subr.mxu0 0.0
    %488 = vmatpush1.msra.mxu0 0.0
    %489 = vmatprep.subr.mxu0 0.0
    %490 = vmatpush1.msra.mxu0 0.0
    %491 = vmatprep.subr.mxu0 0.0
    %492 = vmatpush1.msra.mxu0 0.0
    %493 = vmatprep.subr.mxu0 0.0
    %494 = vmatpush1.msra.mxu0 0.0
    %495 = vmatprep.subr.mxu0 0.0
    %496 = vmatpush1.msra.mxu0 0.0
    %497 = vmatprep.subr.mxu0 0.0
    %498 = vmatpush1.msra.mxu0 0.0
    %499 = vmatprep.subr.mxu0 0.0
    %500 = vmatpush1.msra.mxu0 0.0
    %501 = vmatprep.subr.mxu0 0.0
    %502 = vmatpush1.msra.mxu0 0.0
    %503 = vmatprep.subr.mxu0 0.0
    %504 = vmatpush1.msra.mxu0 0.0
    %505 = vmatprep.subr.mxu0 0.0
    %506 = vmatpush1.msra.mxu0 0.0
    %507 = vmatprep.subr.mxu0 0.0
    %508 = vmatpush1.msra.mxu0 0.0
    %509 = vmatprep.subr.mxu0 0.0
    %510 = vmatpush1.msra.mxu0 0.0
    %511 = vmatprep.subr.mxu0 0.0
    %512 = vmatpush1.msra.mxu0 0.0
    %513 = vmatprep.subr.mxu0 0.0
    %514 = vmatpush1.msra.mxu0 0.0
    %515 = vmatprep.subr.mxu0 0.0
    %516 = vmatpush1.msra.mxu0 0.0
    %517 = vmatprep.subr.mxu0 0.0
    %518 = vmatpush1.msra.mxu0 0.0
    %519 = vmatprep.subr.mxu0 0.0
    %520 = vmatpush1.msra.mxu0 0.0
    %521 = vmatprep.subr.mxu0 0.0
    %522 = vmatpush1.msra.mxu0 0.0
    %523 = vmatprep.subr.mxu0 0.0
    %524 = vmatpush1.msra.mxu0 0.0
    %525 = vmatprep.subr.mxu0 0.0
    %526 = vmatpush1.msra.mxu0 0.0
    %527 = vmatprep.subr.mxu0 0.0
    %528 = vmatpush1.msra.mxu0 0.0
    %529 = vmatprep.mubr.f32.mxu0 0.0
    %530 = vmatmul.mubr.f32.gmra.mrb[0].mxu0 %v179
    %v531 = vpop.f32.mrb[0].mxu0
    %v532 = vadd.f32 %v132, %v531
    %v533 = vpop.f32.mrb[0].mxu0
    %v534 = vadd.f32 %v136, %v533
    %535 = vdwg.mxu0
    %536 = vmatprep.subr.mxu0 %v40
    %537 = vmatpush1.msra.mxu0 %v39
    %538 = vmatprep.subr.mxu0 %v56
    %539 = vmatpush1.msra.mxu0 %v55
    %540 = vmatprep.subr.mxu0 %v72
    %541 = vmatpush1.msra.mxu0 %v71
    %542 = vmatprep.subr.mxu0 %v88
    %543 = vmatpush1.msra.mxu0 %v87
    %544 = vmatprep.subr.mxu0 0.0
    %545 = vmatpush1.msra.mxu0 0.0
    %546 = vmatprep.subr.mxu0 0.0
    %547 = vmatpush1.msra.mxu0 0.0
    %548 = vmatprep.subr.mxu0 0.0
    %549 = vmatpush1.msra.mxu0 0.0
    %550 = vmatprep.subr.mxu0 0.0
    %551 = vmatpush1.msra.mxu0 0.0
    %552 = vmatprep.subr.mxu0 0.0
    %553 = vmatpush1.msra.mxu0 0.0
    %554 = vmatprep.subr.mxu0 0.0
    %555 = vmatpush1.msra.mxu0 0.0
    %556 = vmatprep.subr.mxu0 0.0
    %557 = vmatpush1.msra.mxu0 0.0
    %558 = vmatprep.subr.mxu0 0.0
    %559 = vmatpush1.msra.mxu0 0.0
    %560 = vmatprep.subr.mxu0 0.0
    %561 = vmatpush1.msra.mxu0 0.0
    %562 = vmatprep.subr.mxu0 0.0
    %563 = vmatpush1.msra.mxu0 0.0
    %564 = vmatprep.subr.mxu0 0.0
    %565 = vmatpush1.msra.mxu0 0.0
    %566 = vmatprep.subr.mxu0 0.0
    %567 = vmatpush1.msra.mxu0 0.0
    %568 = vmatprep.subr.mxu0 0.0
    %569 = vmatpush1.msra.mxu0 0.0
    %570 = vmatprep.subr.mxu0 0.0
    %571 = vmatpush1.msra.mxu0 0.0
    %572 = vmatprep.subr.mxu0 0.0
    %573 = vmatpush1.msra.mxu0 0.0
    %574 = vmatprep.subr.mxu0 0.0
    %575 = vmatpush1.msra.mxu0 0.0
    %576 = vmatprep.subr.mxu0 0.0
    %577 = vmatpush1.msra.mxu0 0.0
    %578 = vmatprep.subr.mxu0 0.0
    %579 = vmatpush1.msra.mxu0 0.0
    %580 = vmatprep.subr.mxu0 0.0
    %581 = vmatpush1.msra.mxu0 0.0
    %582 = vmatprep.subr.mxu0 0.0
    %583 = vmatpush1.msra.mxu0 0.0
    %584 = vmatprep.subr.mxu0 0.0
    %585 = vmatpush1.msra.mxu0 0.0
    %586 = vmatprep.subr.mxu0 0.0
    %587 = vmatpush1.msra.mxu0 0.0
    %588 = vmatprep.subr.mxu0 0.0
    %589 = vmatpush1.msra.mxu0 0.0
    %590 = vmatprep.subr.mxu0 0.0
    %591 = vmatpush1.msra.mxu0 0.0
    %592 = vmatprep.subr.mxu0 0.0
    %593 = vmatpush1.msra.mxu0 0.0
    %594 = vmatprep.subr.mxu0 0.0
    %595 = vmatpush1.msra.mxu0 0.0
    %596 = vmatprep.subr.mxu0 0.0
    %597 = vmatpush1.msra.mxu0 0.0
    %598 = vmatprep.subr.mxu0 0.0
    %599 = vmatpush1.msra.mxu0 0.0
    %600 = vmatprep.mubr.f32.mxu0 0.0
    %601 = vmatmul.mubr.f32.gmra.mrb[0].mxu0 %v179
    %v602 = vpop.f32.mrb[0].mxu0
    %v603 = vadd.f32 %v140, %v602
    %v604 = vpop.f32.mrb[0].mxu0
    %v605 = vadd.f32 %v144, %v604
    %606 = vdwg.mxu0
    %607 = vmatprep.subr.mxu0 %v42
    %608 = vmatpush1.msra.mxu0 %v41
    %609 = vmatprep.subr.mxu0 %v58
    %610 = vmatpush1.msra.mxu0 %v57
    %611 = vmatprep.subr.mxu0 %v74
    %612 = vmatpush1.msra.mxu0 %v73
    %613 = vmatprep.subr.mxu0 %v90
    %614 = vmatpush1.msra.mxu0 %v89
    %615 = vmatprep.subr.mxu0 0.0
    %616 = vmatpush1.msra.mxu0 0.0
    %617 = vmatprep.subr.mxu0 0.0
    %618 = vmatpush1.msra.mxu0 0.0
    %619 = vmatprep.subr.mxu0 0.0
    %620 = vmatpush1.msra.mxu0 0.0
    %621 = vmatprep.subr.mxu0 0.0
    %622 = vmatpush1.msra.mxu0 0.0
    %623 = vmatprep.subr.mxu0 0.0
    %624 = vmatpush1.msra.mxu0 0.0
    %625 = vmatprep.subr.mxu0 0.0
    %626 = vmatpush1.msra.mxu0 0.0
    %627 = vmatprep.subr.mxu0 0.0
    %628 = vmatpush1.msra.mxu0 0.0
    %629 = vmatprep.subr.mxu0 0.0
    %630 = vmatpush1.msra.mxu0 0.0
    %631 = vmatprep.subr.mxu0 0.0
    %632 = vmatpush1.msra.mxu0 0.0
    %633 = vmatprep.subr.mxu0 0.0
    %634 = vmatpush1.msra.mxu0 0.0
    %635 = vmatprep.subr.mxu0 0.0
    %636 = vmatpush1.msra.mxu0 0.0
    %637 = vmatprep.subr.mxu0 0.0
    %638 = vmatpush1.msra.mxu0 0.0
    %639 = vmatprep.subr.mxu0 0.0
    %640 = vmatpush1.msra.mxu0 0.0
    %641 = vmatprep.subr.mxu0 0.0
    %642 = vmatpush1.msra.mxu0 0.0
    %643 = vmatprep.subr.mxu0 0.0
    %644 = vmatpush1.msra.mxu0 0.0
    %645 = vmatprep.subr.mxu0 0.0
    %646 = vmatpush1.msra.mxu0 0.0
    %647 = vmatprep.subr.mxu0 0.0
    %648 = vmatpush1.msra.mxu0 0.0
    %649 = vmatprep.subr.mxu0 0.0
    %650 = vmatpush1.msra.mxu0 0.0
    %651 = vmatprep.subr.mxu0 0.0
    %652 = vmatpush1.msra.mxu0 0.0
    %653 = vmatprep.subr.mxu0 0.0
    %654 = vmatpush1.msra.mxu0 0.0
    %655 = vmatprep.subr.mxu0 0.0
    %656 = vmatpush1.msra.mxu0 0.0
    %657 = vmatprep.subr.mxu0 0.0
    %658 = vmatpush1.msra.mxu0 0.0
    %659 = vmatprep.subr.mxu0 0.0
    %660 = vmatpush1.msra.mxu0 0.0
    %661 = vmatprep.subr.mxu0 0.0
    %662 = vmatpush1.msra.mxu0 0.0
    %663 = vmatprep.subr.mxu0 0.0
    %664 = vmatpush1.msra.mxu0 0.0
    %665 = vmatprep.subr.mxu0 0.0
    %666 = vmatpush1.msra.mxu0 0.0
    %667 = vmatprep.subr.mxu0 0.0
    %668 = vmatpush1.msra.mxu0 0.0
    %669 = vmatprep.subr.mxu0 0.0
    %670 = vmatpush1.msra.mxu0 0.0
    %671 = vmatprep.mubr.f32.mxu0 0.0
    %672 = vmatmul.mubr.f32.gmra.mrb[0].mxu0 %v179
    %v673 = vpop.f32.mrb[0].mxu0
    %v674 = vadd.f32 %v148, %v673
    %v675 = vpop.f32.mrb[0].mxu0
    %v676 = vadd.f32 %v152, %v675
    %677 = vdwg.mxu0
    %678 = vmatprep.subr.mxu0 %v44
    %679 = vmatpush1.msra.mxu0 %v43
    %680 = vmatprep.subr.mxu0 %v60
    %681 = vmatpush1.msra.mxu0 %v59
    %682 = vmatprep.subr.mxu0 %v76
    %683 = vmatpush1.msra.mxu0 %v75
    %684 = vmatprep.subr.mxu0 %v92
    %685 = vmatpush1.msra.mxu0 %v91
    %686 = vmatprep.subr.mxu0 0.0
    %687 = vmatpush1.msra.mxu0 0.0
    %688 = vmatprep.subr.mxu0 0.0
    %689 = vmatpush1.msra.mxu0 0.0
    %690 = vmatprep.subr.mxu0 0.0
    %691 = vmatpush1.msra.mxu0 0.0
    %692 = vmatprep.subr.mxu0 0.0
    %693 = vmatpush1.msra.mxu0 0.0
    %694 = vmatprep.subr.mxu0 0.0
    %695 = vmatpush1.msra.mxu0 0.0
    %696 = vmatprep.subr.mxu0 0.0
    %697 = vmatpush1.msra.mxu0 0.0
    %698 = vmatprep.subr.mxu0 0.0
    %699 = vmatpush1.msra.mxu0 0.0
    %700 = vmatprep.subr.mxu0 0.0
    %701 = vmatpush1.msra.mxu0 0.0
    %702 = vmatprep.subr.mxu0 0.0
    %703 = vmatpush1.msra.mxu0 0.0
    %704 = vmatprep.subr.mxu0 0.0
    %705 = vmatpush1.msra.mxu0 0.0
    %706 = vmatprep.subr.mxu0 0.0
    %707 = vmatpush1.msra.mxu0 0.0
    %708 = vmatprep.subr.mxu0 0.0
    %709 = vmatpush1.msra.mxu0 0.0
    %710 = vmatprep.subr.mxu0 0.0
    %711 = vmatpush1.msra.mxu0 0.0
    %712 = vmatprep.subr.mxu0 0.0
    %713 = vmatpush1.msra.mxu0 0.0
    %714 = vmatprep.subr.mxu0 0.0
    %715 = vmatpush1.msra.mxu0 0.0
    %716 = vmatprep.subr.mxu0 0.0
    %717 = vmatpush1.msra.mxu0 0.0
    %718 = vmatprep.subr.mxu0 0.0
    %719 = vmatpush1.msra.mxu0 0.0
    %720 = vmatprep.subr.mxu0 0.0
    %721 = vmatpush1.msra.mxu0 0.0
    %722 = vmatprep.subr.mxu0 0.0
    %723 = vmatpush1.msra.mxu0 0.0
    %724 = vmatprep.subr.mxu0 0.0
    %725 = vmatpush1.msra.mxu0 0.0
    %726 = vmatprep.subr.mxu0 0.0
    %727 = vmatpush1.msra.mxu0 0.0
    %728 = vmatprep.subr.mxu0 0.0
    %729 = vmatpush1.msra.mxu0 0.0
    %730 = vmatprep.subr.mxu0 0.0
    %731 = vmatpush1.msra.mxu0 0.0
    %732 = vmatprep.subr.mxu0 0.0
    %733 = vmatpush1.msra.mxu0 0.0
    %734 = vmatprep.subr.mxu0 0.0
    %735 = vmatpush1.msra.mxu0 0.0
    %736 = vmatprep.subr.mxu0 0.0
    %737 = vmatpush1.msra.mxu0 0.0
    %738 = vmatprep.subr.mxu0 0.0
    %739 = vmatpush1.msra.mxu0 0.0
    %740 = vmatprep.subr.mxu0 0.0
    %741 = vmatpush1.msra.mxu0 0.0
    %742 = vmatprep.mubr.f32.mxu0 0.0
    %743 = vmatmul.mubr.f32.gmra.mrb[0].mxu0 %v179
    %v744 = vpop.f32.mrb[0].mxu0
    %v745 = vadd.f32 %v156, %v744
    %v746 = vpop.f32.mrb[0].mxu0
    %v747 = vadd.f32 %v160, %v746
    %748 = vdwg.mxu0
    %749 = vst [vmem:[%s3] sm:$0xff] %v248
    %750 = vst [vmem:[%s3 + $0x8] sm:$0xff] %v250
    %751 = vst [vmem:[%s3 + $0x10] sm:$0xff] %v319
    %752 = vst [vmem:[%s3 + $0x18] sm:$0xff] %v321
    %753 = vst [vmem:[%s3 + $0x20] sm:$0xff] %v390
    %754 = vst [vmem:[%s3 + $0x28] sm:$0xff] %v392
    %755 = vst [vmem:[%s3 + $0x30] sm:$0xff] %v461
    %756 = vst [vmem:[%s3 + $0x38] sm:$0xff] %v463
    %757 = vst [vmem:[%s3 + $0x40] sm:$0xff] %v532
    %758 = vst [vmem:[%s3 + $0x48] sm:$0xff] %v534
    %759 = vst [vmem:[%s3 + $0x50] sm:$0xff] %v603
    %760 = vst [vmem:[%s3 + $0x58] sm:$0xff] %v605
    %761 = vst [vmem:[%s3 + $0x60] sm:$0xff] %v674
    %762 = vst [vmem:[%s3 + $0x68] sm:$0xff] %v676
    %763 = vst [vmem:[%s3 + $0x70] sm:$0xff] %v745
    %764 = vst [vmem:[%s3 + $0x78] sm:$0xff] %v747
    // Predicated region
    $region18: #{_fwd.1} parent=1 // pred_check
      _
    $region19: #{_fwd.1} parent=1 // pred_check_branch
      %766 = sbr.rel (0) target = $region21
    $region20: #{_fwd.1} parent=1 // pred_region
      _
    $region21: #{_fwd.1} parent=1 // pred_fallthru
      _
    // Predicated region
    $region22: #{_fwd.1} parent=1 // pred_check
      _
    $region23: #{_fwd.1} parent=1 // pred_check_branch
      %768 = sbr.rel (0) target = $region25
    $region24: #{_fwd.1} parent=1 // pred_region
      _
    $region25: #{_fwd.1} parent=1 // pred_fallthru
      _
    %769 = vsyncpa [#allocation3], 1

</llo_original>
